<compile_context>
chip_gen: v5e
topology: v5e:2x2
jax: 0.10.0
libtpu: 0.0.40
codegen_flags: <defaults>
</compile_context>

<pallas_src>
import jax
import jax.numpy as jnp
from jax.experimental import pallas as pl
from jax.experimental.pallas import tpu as pltpu

# Static shapes (from annotate_args).
C, H_IN, W_IN = 4, 6, 5
OH, OW = 7, 6
HW = H_IN * W_IN            # 30  per-channel grad_input spatial size
OHW = OH * OW               # 42  per-channel grad_output spatial size
KTOT = C * OHW              # 168 total scatter sources
NTOT = C * HW               # 120 total scatter destinations
HW_PAD = 128                # lane-padded destination axis (unmasked vst)


def _maxpool_bwd_kernel(go_ref, idx_ref, gi_ref):
    """Dense per-channel one-hot scatter-add.

    go_ref : (C, OHW)    f32  grad_output, channel on sublanes, sources on lanes
    idx_ref: (C, OHW)    i32  per-channel flat destination index (h*W + w), < HW
    gi_ref : (C, HW_PAD) f32  grad_input, destinations on lanes (lanes >= HW stay 0)
    """
    # Move sources onto sublanes (two tiny XLU transposes; XLU slot has slack,
    # and doing it in-kernel avoids any wrapper-side fusion / HBM roundtrip).
    go_t = jnp.transpose(go_ref[...])      # (OHW, C) f32
    idx_t = jnp.transpose(idx_ref[...])    # (OHW, C) i32

    # Candidate destination positions along lanes. Indices are < HW (=30), so
    # lanes HW..HW_PAD-1 never match and the padded output stays zero.
    pos = jax.lax.broadcasted_iota(jnp.int32, (OHW, HW_PAD), 1)

    # Static unroll over C=4: per step only ~6 f32 vregs of (OHW, HW_PAD)
    # intermediates are live — well under the 64-vreg budget, no spill risk.
    for c in range(C):
        idx_c = idx_t[:, c:c + 1]                      # (OHW, 1)
        go_c = go_t[:, c:c + 1]                        # (OHW, 1)
        hit = idx_c == pos                             # (OHW, HW_PAD) VPU compare
        contrib = jnp.where(hit, go_c, 0.0)            # VPU select
        # Accumulate duplicate destinations: reduce over the source (sublane) axis.
        gi_ref[pl.ds(c, 1), :] = jnp.sum(contrib, axis=0, keepdims=True)


def max_pool2d_with_indices_backward_pallas(grad_output, x_input, indices):
    """grad_output:(C,OH,OW) f32, x_input:(C,H,W) f32, indices:(C,OH,OW) int."""
    assert grad_output.shape == (C, OH, OW)
    assert x_input.shape == (C, H_IN, W_IN)
    assert indices.shape == (C, OH, OW)

    # int64 -> int32 is lossless here (valid values < H*W = 30); Pallas TPU has
    # no native s64 path, so any cast must stay outside the kernel. With the
    # default no-x64 JAX config this is already int32 and the cast is a no-op.
    idx32 = indices if indices.dtype == jnp.int32 else indices.astype(jnp.int32)

    # Contiguous (row-major) reshapes only — bitcast-level, no extra fusion.
    go2 = grad_output.reshape(C, OHW)
    idx2 = idx32.reshape(C, OHW)

    gi_pad = pl.pallas_call(
        _maxpool_bwd_kernel,
        out_shape=jax.ShapeDtypeStruct((C, HW_PAD), jnp.float32),
        # Single invocation (no grid): whole arrays resident in VMEM.
        in_specs=[
            pl.BlockSpec(memory_space=pltpu.MemorySpace.VMEM),
            pl.BlockSpec(memory_space=pltpu.MemorySpace.VMEM),
        ],
        out_specs=pl.BlockSpec(memory_space=pltpu.MemorySpace.VMEM),
        # Advisory: tell XLA this custom call is negligible.
        cost_estimate=pl.CostEstimate(
            flops=2 * KTOT * NTOT,
            transcendentals=0,
            bytes_accessed=KTOT * 8 + C * HW_PAD * 4,
        ),
    )(go2, idx2)

    # Drop the lane padding and restore (C, H, W).
    return gi_pad[:, :HW].reshape(C, H_IN, W_IN)


def _reference(grad_output, indices):
    """Pure-JAX reference: per-channel scatter-add into grad_input."""
    go_flat = grad_output.reshape(C, OHW)
    idx_flat = indices.reshape(C, OHW).astype(jnp.int32)
    gi = jnp.zeros((C, HW), jnp.float32)
    gi = gi.at[jnp.arange(C)[:, None], idx_flat].add(go_flat)
    return gi.reshape(C, H_IN, W_IN)


if __name__ == "__main__":
    key = jax.random.PRNGKey(0)
    k1, k2, k3 = jax.random.split(key, 3)

    grad_output = jax.random.normal(k1, (C, OH, OW), dtype=jnp.float32)
    x_input = jax.random.normal(k2, (C, H_IN, W_IN), dtype=jnp.float32)
    # PyTorch passes int64 indices; valid values are < H*W = 30, so int32 is
    # lossless (default JAX config has no x64; TPU has no native s64 path).
    indices = jax.random.randint(k3, (C, OH, OW), 0, HW, dtype=jnp.int32)

    y = max_pool2d_with_indices_backward_pallas(grad_output, x_input, indices)
    jax.block_until_ready(y)

    assert y.shape == (C, H_IN, W_IN), y.shape
    y_ref = _reference(grad_output, indices)
    assert jnp.allclose(y, y_ref, atol=1e-5, rtol=1e-5), "mismatch vs reference"

    print("KERNEL_OK")
</pallas_src>

<mosaic_0001>
module attributes {stable_mosaic.version = 11 : i64} {
  func.func @_maxpool_bwd_kernel(%arg0: memref<4x42xf32, #tpu.memory_space<vmem>>, %arg1: memref<4x42xi32, #tpu.memory_space<vmem>>, %arg2: memref<4x128xf32, #tpu.memory_space<vmem>>) attributes {dimension_semantics = [], scalar_prefetch = 0 : i64, scratch_operands = 0 : i64, tpu.core_type = #tpu.core_type<tc>} {
    %c0 = arith.constant 0 : index
    %c0_0 = arith.constant 0 : index
    %0 = vector.load %arg0[%c0, %c0_0] : memref<4x42xf32, #tpu.memory_space<vmem>>, vector<4x42xf32>
    %1 = tpu.transpose %0, [1, 0] : vector<4x42xf32> -> vector<42x4xf32>
    %c0_1 = arith.constant 0 : index
    %c0_2 = arith.constant 0 : index
    %2 = vector.load %arg1[%c0_1, %c0_2] : memref<4x42xi32, #tpu.memory_space<vmem>>, vector<4x42xi32>
    %3 = tpu.transpose %2, [1, 0] : vector<4x42xi32> -> vector<42x4xi32>
    %4 = tpu.iota {dimensions = array<i32: 1>} : vector<42x128xi32>
    %5 = vector.extract_strided_slice %3 {offsets = [0, 0], sizes = [42, 1], strides = [1, 1]} : vector<42x4xi32> to vector<42x1xi32>
    %6 = vector.extract_strided_slice %1 {offsets = [0, 0], sizes = [42, 1], strides = [1, 1]} : vector<42x4xf32> to vector<42x1xf32>
    %7 = vector.broadcast %5 : vector<42x1xi32> to vector<42x128xi32>
    %8 = arith.cmpi eq, %7, %4 : vector<42x128xi32>
    %cst = arith.constant 0.000000e+00 : f32
    %9 = vector.shape_cast %6 : vector<42x1xf32> to vector<42x1xf32>
    %10 = vector.broadcast %9 : vector<42x1xf32> to vector<42x128xf32>
    %11 = vector.broadcast %cst : f32 to vector<42x128xf32>
    %12 = arith.select %8, %10, %11 : vector<42x128xi1>, vector<42x128xf32>
    %cst_3 = arith.constant dense<0.000000e+00> : vector<128xf32>
    %13 = vector.multi_reduction <add>, %12, %cst_3 [0] : vector<42x128xf32> to vector<128xf32>
    %14 = vector.shape_cast %13 : vector<128xf32> to vector<1x128xf32>
    %c0_4 = arith.constant 0 : index
    %c0_5 = arith.constant 0 : index
    %15 = vector.load %arg2[%c0_4, %c0_5] : memref<4x128xf32, #tpu.memory_space<vmem>>, vector<1x128xf32>
    tpu.vector_store %arg2[%c0_4, %c0_5], %14 {strides = array<i32>} : memref<4x128xf32, #tpu.memory_space<vmem>>, vector<1x128xf32>,
    %16 = vector.extract_strided_slice %3 {offsets = [0, 1], sizes = [42, 1], strides = [1, 1]} : vector<42x4xi32> to vector<42x1xi32>
    %17 = vector.extract_strided_slice %1 {offsets = [0, 1], sizes = [42, 1], strides = [1, 1]} : vector<42x4xf32> to vector<42x1xf32>
    %18 = vector.broadcast %16 : vector<42x1xi32> to vector<42x128xi32>
    %19 = arith.cmpi eq, %18, %4 : vector<42x128xi32>
    %cst_6 = arith.constant 0.000000e+00 : f32
    %20 = vector.shape_cast %17 : vector<42x1xf32> to vector<42x1xf32>
    %21 = vector.broadcast %20 : vector<42x1xf32> to vector<42x128xf32>
    %22 = vector.broadcast %cst_6 : f32 to vector<42x128xf32>
    %23 = arith.select %19, %21, %22 : vector<42x128xi1>, vector<42x128xf32>
    %cst_7 = arith.constant dense<0.000000e+00> : vector<128xf32>
    %24 = vector.multi_reduction <add>, %23, %cst_7 [0] : vector<42x128xf32> to vector<128xf32>
    %25 = vector.shape_cast %24 : vector<128xf32> to vector<1x128xf32>
    %c1 = arith.constant 1 : index
    %c0_8 = arith.constant 0 : index
    %26 = vector.load %arg2[%c1, %c0_8] : memref<4x128xf32, #tpu.memory_space<vmem>>, vector<1x128xf32>
    tpu.vector_store %arg2[%c1, %c0_8], %25 {strides = array<i32>} : memref<4x128xf32, #tpu.memory_space<vmem>>, vector<1x128xf32>,
    %27 = vector.extract_strided_slice %3 {offsets = [0, 2], sizes = [42, 1], strides = [1, 1]} : vector<42x4xi32> to vector<42x1xi32>
    %28 = vector.extract_strided_slice %1 {offsets = [0, 2], sizes = [42, 1], strides = [1, 1]} : vector<42x4xf32> to vector<42x1xf32>
    %29 = vector.broadcast %27 : vector<42x1xi32> to vector<42x128xi32>
    %30 = arith.cmpi eq, %29, %4 : vector<42x128xi32>
    %cst_9 = arith.constant 0.000000e+00 : f32
    %31 = vector.shape_cast %28 : vector<42x1xf32> to vector<42x1xf32>
    %32 = vector.broadcast %31 : vector<42x1xf32> to vector<42x128xf32>
    %33 = vector.broadcast %cst_9 : f32 to vector<42x128xf32>
    %34 = arith.select %30, %32, %33 : vector<42x128xi1>, vector<42x128xf32>
    %cst_10 = arith.constant dense<0.000000e+00> : vector<128xf32>
    %35 = vector.multi_reduction <add>, %34, %cst_10 [0] : vector<42x128xf32> to vector<128xf32>
    %36 = vector.shape_cast %35 : vector<128xf32> to vector<1x128xf32>
    %c2 = arith.constant 2 : index
    %c0_11 = arith.constant 0 : index
    %37 = vector.load %arg2[%c2, %c0_11] : memref<4x128xf32, #tpu.memory_space<vmem>>, vector<1x128xf32>
    tpu.vector_store %arg2[%c2, %c0_11], %36 {strides = array<i32>} : memref<4x128xf32, #tpu.memory_space<vmem>>, vector<1x128xf32>,
    %38 = vector.extract_strided_slice %3 {offsets = [0, 3], sizes = [42, 1], strides = [1, 1]} : vector<42x4xi32> to vector<42x1xi32>
    %39 = vector.extract_strided_slice %1 {offsets = [0, 3], sizes = [42, 1], strides = [1, 1]} : vector<42x4xf32> to vector<42x1xf32>
    %40 = vector.broadcast %38 : vector<42x1xi32> to vector<42x128xi32>
    %41 = arith.cmpi eq, %40, %4 : vector<42x128xi32>
    %cst_12 = arith.constant 0.000000e+00 : f32
    %42 = vector.shape_cast %39 : vector<42x1xf32> to vector<42x1xf32>
    %43 = vector.broadcast %42 : vector<42x1xf32> to vector<42x128xf32>
    %44 = vector.broadcast %cst_12 : f32 to vector<42x128xf32>
    %45 = arith.select %41, %43, %44 : vector<42x128xi1>, vector<42x128xf32>
    %cst_13 = arith.constant dense<0.000000e+00> : vector<128xf32>
    %46 = vector.multi_reduction <add>, %45, %cst_13 [0] : vector<42x128xf32> to vector<128xf32>
    %47 = vector.shape_cast %46 : vector<128xf32> to vector<1x128xf32>
    %c3 = arith.constant 3 : index
    %c0_14 = arith.constant 0 : index
    %48 = vector.load %arg2[%c3, %c0_14] : memref<4x128xf32, #tpu.memory_space<vmem>>, vector<1x128xf32>
    tpu.vector_store %arg2[%c3, %c0_14], %47 {strides = array<i32>} : memref<4x128xf32, #tpu.memory_space<vmem>>, vector<1x128xf32>,
    return
  }
}

</mosaic_0001>

<llo_original>
// kernel: tpu_custom_call.1
$region0: #{tpu_custom_call.1}
  #allocation0 [shape = 'u32[]', space=smem, size = 0x4, offset = 0x4, fixed_abs, tag = 'smem constant byte address 0x4 - core index']
  #allocation1 [shape = 'u32[72,128]{1,0:T(1,128)}', space=vmem, size = 0x9000, scoped, tag = 'internal scratch']
  %s0 = inlined_call_operand.hbm [shape: f32[4,42], index: 0, kind: input, shape index: {}]
  %s1 = inlined_call_operand.hbm [shape: s32[4,42], index: 1, kind: input, shape index: {}]
  %s2 = inlined_call_operand.hbm [shape: f32[4,128], index: 2, kind: output, shape index: {}]
  %s3 = sld [smem:[#allocation0]]
  $region26: #{tpu_custom_call.1} parent=0
    _
  %s5 = ssub.s32 1, %s3
  %s6 = scalar_select 0, %s5, %s3
  $region1: #{tpu_custom_call.1} parent=0
    #allocation2 [shape = 'u8[2048]{0}', space=vmem, size = 0x800, scoped, tag = 'input window, operand 0, single buffered']
    #allocation3 [shape = 's32[1]{0}', space=sflag, size = 0x4, scoped, tag = 'scoped memory for tpu_custom_call.1']
    #allocation4 [shape = 's32[1]{0}', space=sflag, size = 0x4, scoped, tag = 'scoped memory for tpu_custom_call.1']
    #allocation5 [shape = 'u8[2048]{0}', space=vmem, size = 0x800, scoped, tag = 'input window, operand 1, single buffered']
    #allocation6 [shape = 's32[1]{0}', space=sflag, size = 0x4, scoped, tag = 'scoped memory for tpu_custom_call.1']
    #allocation7 [shape = 'u8[2048]{0}', space=vmem, size = 0x800, scoped, tag = 'output window, operand 0, single buffered']
    %7 = vsyncpa [#allocation3], 0
    %8 = vsyncpa [#allocation6], 0
    %9 = vsyncpa [#allocation4], 0
    // Predicated region
    $region2: #{tpu_custom_call.1} parent=1 // pred_check
      _
    $region3: #{tpu_custom_call.1} parent=1 // pred_check_branch
      %11 = sbr.rel (0) target = $region5
    $region4: #{tpu_custom_call.1} parent=1 // pred_region
      %13 = vsyncadd [#allocation3], 0
      %s15 = sshll.u32 %s0, 4
      %s16 = int_to_ptr.hbm [resolvable:$true] %s15
      %s17 = sshll.u32 [#allocation2], 4
      %s18 = int_to_ptr.vmem [resolvable:$true] %s17
      %20 = dma.hbm_to_vmem [thread:$0]  %s16, 64, %s18, [#allocation3]
    $region5: #{tpu_custom_call.1} parent=1 // pred_fallthru
      _
    // Predicated region
    $region6: #{tpu_custom_call.1} parent=1 // pred_check
      _
    $region7: #{tpu_custom_call.1} parent=1 // pred_check_branch
      %22 = sbr.rel (0) target = $region9
    $region8: #{tpu_custom_call.1} parent=1 // pred_region
      %24 = vsyncadd [#allocation6], 0
      %s26 = sshll.u32 %s1, 4
      %s27 = int_to_ptr.hbm [resolvable:$true] %s26
      %s28 = sshll.u32 [#allocation5], 4
      %s29 = int_to_ptr.vmem [resolvable:$true] %s28
      %31 = dma.hbm_to_vmem [thread:$0]  %s27, 64, %s29, [#allocation6]
    $region9: #{tpu_custom_call.1} parent=1 // pred_fallthru
      _
    // Predicated region
    $region10: #{tpu_custom_call.1} parent=1 // pred_check
      _
    $region11: #{tpu_custom_call.1} parent=1 // pred_check_branch
      %33 = sbr.rel (0) target = $region13
    $region12: #{tpu_custom_call.1} parent=1 // pred_region
      %35 = dma.done [#allocation3], 64
    $region13: #{tpu_custom_call.1} parent=1 // pred_fallthru
      _
    // Predicated region
    $region14: #{tpu_custom_call.1} parent=1 // pred_check
      _
    $region15: #{tpu_custom_call.1} parent=1 // pred_check_branch
      %37 = sbr.rel (0) target = $region17
    $region16: #{tpu_custom_call.1} parent=1 // pred_region
      %39 = dma.done [#allocation6], 64
    $region17: #{tpu_custom_call.1} parent=1 // pred_fallthru
      _
    %v40 = vld [vmem:[#allocation2] sm:$0xf]
    %41 = vxpose.xlu0.b32.start [1/16] %v40, 128
    %42 = vxpose.xlu0.b32.cont [2/16] 0.0, 128
    %43 = vxpose.xlu0.b32.cont [3/16] 0.0, 128
    %44 = vxpose.xlu0.b32.cont [4/16] 0.0, 128
    %45 = vxpose.xlu0.b32.cont [5/16] 0.0, 128
    %46 = vxpose.xlu0.b32.cont [6/16] 0.0, 128
    %47 = vxpose.xlu0.b32.cont [7/16] 0.0, 128
    %48 = vxpose.xlu0.b32.cont [8/16] 0.0, 128
    %49 = vxpose.xlu0.b32.cont [9/16] 0.0, 128
    %50 = vxpose.xlu0.b32.cont [10/16] 0.0, 128
    %51 = vxpose.xlu0.b32.cont [11/16] 0.0, 128
    %52 = vxpose.xlu0.b32.cont [12/16] 0.0, 128
    %53 = vxpose.xlu0.b32.cont [13/16] 0.0, 128
    %54 = vxpose.xlu0.b32.cont [14/16] 0.0, 128
    %55 = vxpose.xlu0.b32.cont [15/16] 0.0, 128
    %56 = vxpose.xlu0.b32.end [16/16] 0.0, 128
    %v57 = vpop.trf.xlu0
    %v58 = vpop.trf.xlu0
    %v59 = vpop.trf.xlu0
    %v60 = vpop.trf.xlu0
    %v61 = vpop.trf.xlu0
    %v62 = vpop.trf.xlu0
    %v63 = vpop.trf.xlu0
    %v64 = vpop.trf.xlu0
    %v65 = vpop.trf.xlu0
    %v66 = vpop.trf.xlu0
    %v67 = vpop.trf.xlu0
    %v68 = vpop.trf.xlu0
    %v69 = vpop.trf.xlu0
    %v70 = vpop.trf.xlu0
    %v71 = vpop.trf.xlu0
    %v72 = vpop.trf.xlu0
    %v73 = vld [vmem:[#allocation5] sm:$0xf]
    %74 = vxpose.xlu0.b32.start [1/16] %v73, 128
    %75 = vxpose.xlu0.b32.cont [2/16] 0, 128
    %76 = vxpose.xlu0.b32.cont [3/16] 0, 128
    %77 = vxpose.xlu0.b32.cont [4/16] 0, 128
    %78 = vxpose.xlu0.b32.cont [5/16] 0, 128
    %79 = vxpose.xlu0.b32.cont [6/16] 0, 128
    %80 = vxpose.xlu0.b32.cont [7/16] 0, 128
    %81 = vxpose.xlu0.b32.cont [8/16] 0, 128
    %82 = vxpose.xlu0.b32.cont [9/16] 0, 128
    %83 = vxpose.xlu0.b32.cont [10/16] 0, 128
    %84 = vxpose.xlu0.b32.cont [11/16] 0, 128
    %85 = vxpose.xlu0.b32.cont [12/16] 0, 128
    %86 = vxpose.xlu0.b32.cont [13/16] 0, 128
    %87 = vxpose.xlu0.b32.cont [14/16] 0, 128
    %88 = vxpose.xlu0.b32.cont [15/16] 0, 128
    %89 = vxpose.xlu0.b32.end [16/16] 0, 128
    %v90 = vpop.trf.xlu0
    %v91 = vpop.trf.xlu0
    %v92 = vpop.trf.xlu0
    %v93 = vpop.trf.xlu0
    %v94 = vpop.trf.xlu0
    %v95 = vpop.trf.xlu0
    %v96 = vpop.trf.xlu0
    %v97 = vpop.trf.xlu0
    %v98 = vpop.trf.xlu0
    %v99 = vpop.trf.xlu0
    %v100 = vpop.trf.xlu0
    %v101 = vpop.trf.xlu0
    %v102 = vpop.trf.xlu0
    %v103 = vpop.trf.xlu0
    %v104 = vpop.trf.xlu0
    %v105 = vpop.trf.xlu0
    %v106 = vlaneseq
    %v107 = vand.u32 %v106, 127
    %108 = vset.pattern.permute.xlu0 0
    %109 = vperm.xlu0 %108, %v90
    %v110 = vpop.permute.xlu0 %109
    %111 = vset.pattern.permute.xlu0 0
    %112 = vperm.xlu0 %111, %v91
    %v113 = vpop.permute.xlu0 %112
    %114 = vset.pattern.permute.xlu0 0
    %115 = vperm.xlu0 %114, %v92
    %v116 = vpop.permute.xlu0 %115
    %117 = vset.pattern.permute.xlu0 0
    %118 = vperm.xlu0 %117, %v93
    %v119 = vpop.permute.xlu0 %118
    %120 = vset.pattern.permute.xlu0 0
    %121 = vperm.xlu0 %120, %v94
    %v122 = vpop.permute.xlu0 %121
    %123 = vset.pattern.permute.xlu0 0
    %124 = vperm.xlu0 %123, %v95
    %v125 = vpop.permute.xlu0 %124
    %vm126 = vcmp.eq.s32.totalorder %v110, %v107
    %vm127 = vcmp.eq.s32.totalorder %v113, %v107
    %vm128 = vcmp.eq.s32.totalorder %v116, %v107
    %vm129 = vcmp.eq.s32.totalorder %v119, %v107
    %vm130 = vcmp.eq.s32.totalorder %v122, %v107
    %vm131 = vcmp.eq.s32.totalorder %v125, %v107
    %133 = vset.pattern.permute.xlu0 0
    %134 = vperm.xlu0 %133, %v57
    %v135 = vpop.permute.xlu0 %134
    %138 = vset.pattern.permute.xlu0 0
    %139 = vperm.xlu0 %138, %v58
    %v140 = vpop.permute.xlu0 %139
    %143 = vset.pattern.permute.xlu0 0
    %144 = vperm.xlu0 %143, %v59
    %v145 = vpop.permute.xlu0 %144
    %148 = vset.pattern.permute.xlu0 0
    %149 = vperm.xlu0 %148, %v60
    %v150 = vpop.permute.xlu0 %149
    %153 = vset.pattern.permute.xlu0 0
    %154 = vperm.xlu0 %153, %v61
    %v155 = vpop.permute.xlu0 %154
    %158 = vset.pattern.permute.xlu0 0
    %159 = vperm.xlu0 %158, %v62
    %v160 = vpop.permute.xlu0 %159
    %v162 = vsel %vm126, %v135, 0.0
    %v163 = vsel %vm127, %v140, 0.0
    %v164 = vsel %vm128, %v145, 0.0
    %v165 = vsel %vm129, %v150, 0.0
    %v166 = vsel %vm130, %v155, 0.0
    %v167 = vsel %vm131, %v160, 0.0
    %v168 = vadd.f32 %v162, %v163
    %v169 = vadd.f32 %v168, %v164
    %v170 = vadd.f32 %v169, %v165
    %v171 = vadd.f32 %v170, %v166
    %vm172 = vcmask 1041408
    %v173 = vsel %vm172, %v167, 0.0
    %v174 = vadd.f32 %v171, %v173
    %v175 = vrot.slane %v174, 4
    %v176 = vadd.f32 %v174, %v175
    %v177 = vrot.slane %v176, 2
    %v178 = vadd.f32 %v176, %v177
    %v179 = vrot.slane %v178, 1
    %v180 = vadd.f32 %v178, %v179
    %181 = vst [vmem:[#allocation7] sm:$0x1] %v180
    %182 = vset.pattern.permute.xlu0 1
    %183 = vperm.xlu0 %182, %v90
    %v184 = vpop.permute.xlu0 %183
    %185 = vset.pattern.permute.xlu0 1
    %186 = vperm.xlu0 %185, %v91
    %v187 = vpop.permute.xlu0 %186
    %188 = vset.pattern.permute.xlu0 1
    %189 = vperm.xlu0 %188, %v92
    %v190 = vpop.permute.xlu0 %189
    %191 = vset.pattern.permute.xlu0 1
    %192 = vperm.xlu0 %191, %v93
    %v193 = vpop.permute.xlu0 %192
    %194 = vset.pattern.permute.xlu0 1
    %195 = vperm.xlu0 %194, %v94
    %v196 = vpop.permute.xlu0 %195
    %197 = vset.pattern.permute.xlu0 1
    %198 = vperm.xlu0 %197, %v95
    %v199 = vpop.permute.xlu0 %198
    %vm200 = vcmp.eq.s32.totalorder %v184, %v107
    %vm201 = vcmp.eq.s32.totalorder %v187, %v107
    %vm202 = vcmp.eq.s32.totalorder %v190, %v107
    %vm203 = vcmp.eq.s32.totalorder %v193, %v107
    %vm204 = vcmp.eq.s32.totalorder %v196, %v107
    %vm205 = vcmp.eq.s32.totalorder %v199, %v107
    %206 = vset.pattern.permute.xlu0 1
    %207 = vperm.xlu0 %206, %v57
    %v208 = vpop.permute.xlu0 %207
    %210 = vset.pattern.permute.xlu0 1
    %211 = vperm.xlu0 %210, %v58
    %v212 = vpop.permute.xlu0 %211
    %214 = vset.pattern.permute.xlu0 1
    %215 = vperm.xlu0 %214, %v59
    %v216 = vpop.permute.xlu0 %215
    %218 = vset.pattern.permute.xlu0 1
    %219 = vperm.xlu0 %218, %v60
    %v220 = vpop.permute.xlu0 %219
    %222 = vset.pattern.permute.xlu0 1
    %223 = vperm.xlu0 %222, %v61
    %v224 = vpop.permute.xlu0 %223
    %226 = vset.pattern.permute.xlu0 1
    %227 = vperm.xlu0 %226, %v62
    %v228 = vpop.permute.xlu0 %227
    %v230 = vsel %vm200, %v208, 0.0
    %v231 = vsel %vm201, %v212, 0.0
    %v232 = vsel %vm202, %v216, 0.0
    %v233 = vsel %vm203, %v220, 0.0
    %v234 = vsel %vm204, %v224, 0.0
    %v235 = vsel %vm205, %v228, 0.0
    %v236 = vadd.f32 %v230, %v231
    %v237 = vadd.f32 %v236, %v232
    %v238 = vadd.f32 %v237, %v233
    %v239 = vadd.f32 %v238, %v234
    %v240 = vsel %vm172, %v235, 0.0
    %v241 = vadd.f32 %v239, %v240
    %v242 = vrot.slane %v241, 4
    %v243 = vadd.f32 %v241, %v242
    %v244 = vrot.slane %v243, 2
    %v245 = vadd.f32 %v243, %v244
    %v246 = vrot.slane %v245, 1
    %v247 = vadd.f32 %v245, %v246
    %248 = vst [vmem:[#allocation7 + $0x1] sm:$0x1] %v247
    %249 = vset.pattern.permute.xlu0 2
    %250 = vperm.xlu0 %249, %v90
    %v251 = vpop.permute.xlu0 %250
    %252 = vset.pattern.permute.xlu0 2
    %253 = vperm.xlu0 %252, %v91
    %v254 = vpop.permute.xlu0 %253
    %255 = vset.pattern.permute.xlu0 2
    %256 = vperm.xlu0 %255, %v92
    %v257 = vpop.permute.xlu0 %256
    %258 = vset.pattern.permute.xlu0 2
    %259 = vperm.xlu0 %258, %v93
    %v260 = vpop.permute.xlu0 %259
    %261 = vset.pattern.permute.xlu0 2
    %262 = vperm.xlu0 %261, %v94
    %v263 = vpop.permute.xlu0 %262
    %264 = vset.pattern.permute.xlu0 2
    %265 = vperm.xlu0 %264, %v95
    %v266 = vpop.permute.xlu0 %265
    %vm267 = vcmp.eq.s32.totalorder %v251, %v107
    %vm268 = vcmp.eq.s32.totalorder %v254, %v107
    %vm269 = vcmp.eq.s32.totalorder %v257, %v107
    %vm270 = vcmp.eq.s32.totalorder %v260, %v107
    %vm271 = vcmp.eq.s32.totalorder %v263, %v107
    %vm272 = vcmp.eq.s32.totalorder %v266, %v107
    %273 = vset.pattern.permute.xlu0 2
    %274 = vperm.xlu0 %273, %v57
    %v275 = vpop.permute.xlu0 %274
    %277 = vset.pattern.permute.xlu0 2
    %278 = vperm.xlu0 %277, %v58
    %v279 = vpop.permute.xlu0 %278
    %281 = vset.pattern.permute.xlu0 2
    %282 = vperm.xlu0 %281, %v59
    %v283 = vpop.permute.xlu0 %282
    %285 = vset.pattern.permute.xlu0 2
    %286 = vperm.xlu0 %285, %v60
    %v287 = vpop.permute.xlu0 %286
    %289 = vset.pattern.permute.xlu0 2
    %290 = vperm.xlu0 %289, %v61
    %v291 = vpop.permute.xlu0 %290
    %293 = vset.pattern.permute.xlu0 2
    %294 = vperm.xlu0 %293, %v62
    %v295 = vpop.permute.xlu0 %294
    %v297 = vsel %vm267, %v275, 0.0
    %v298 = vsel %vm268, %v279, 0.0
    %v299 = vsel %vm269, %v283, 0.0
    %v300 = vsel %vm270, %v287, 0.0
    %v301 = vsel %vm271, %v291, 0.0
    %v302 = vsel %vm272, %v295, 0.0
    %v303 = vadd.f32 %v297, %v298
    %v304 = vadd.f32 %v303, %v299
    %v305 = vadd.f32 %v304, %v300
    %v306 = vadd.f32 %v305, %v301
    %v307 = vsel %vm172, %v302, 0.0
    %v308 = vadd.f32 %v306, %v307
    %v309 = vrot.slane %v308, 4
    %v310 = vadd.f32 %v308, %v309
    %v311 = vrot.slane %v310, 2
    %v312 = vadd.f32 %v310, %v311
    %v313 = vrot.slane %v312, 1
    %v314 = vadd.f32 %v312, %v313
    %315 = vst [vmem:[#allocation7 + $0x2] sm:$0x1] %v314
    %316 = vset.pattern.permute.xlu0 3
    %317 = vperm.xlu0 %316, %v90
    %v318 = vpop.permute.xlu0 %317
    %319 = vset.pattern.permute.xlu0 3
    %320 = vperm.xlu0 %319, %v91
    %v321 = vpop.permute.xlu0 %320
    %322 = vset.pattern.permute.xlu0 3
    %323 = vperm.xlu0 %322, %v92
    %v324 = vpop.permute.xlu0 %323
    %325 = vset.pattern.permute.xlu0 3
    %326 = vperm.xlu0 %325, %v93
    %v327 = vpop.permute.xlu0 %326
    %328 = vset.pattern.permute.xlu0 3
    %329 = vperm.xlu0 %328, %v94
    %v330 = vpop.permute.xlu0 %329
    %331 = vset.pattern.permute.xlu0 3
    %332 = vperm.xlu0 %331, %v95
    %v333 = vpop.permute.xlu0 %332
    %vm334 = vcmp.eq.s32.totalorder %v318, %v107
    %vm335 = vcmp.eq.s32.totalorder %v321, %v107
    %vm336 = vcmp.eq.s32.totalorder %v324, %v107
    %vm337 = vcmp.eq.s32.totalorder %v327, %v107
    %vm338 = vcmp.eq.s32.totalorder %v330, %v107
    %vm339 = vcmp.eq.s32.totalorder %v333, %v107
    %340 = vset.pattern.permute.xlu0 3
    %341 = vperm.xlu0 %340, %v57
    %v342 = vpop.permute.xlu0 %341
    %344 = vset.pattern.permute.xlu0 3
    %345 = vperm.xlu0 %344, %v58
    %v346 = vpop.permute.xlu0 %345
    %348 = vset.pattern.permute.xlu0 3
    %349 = vperm.xlu0 %348, %v59
    %v350 = vpop.permute.xlu0 %349
    %352 = vset.pattern.permute.xlu0 3
    %353 = vperm.xlu0 %352, %v60
    %v354 = vpop.permute.xlu0 %353
    %356 = vset.pattern.permute.xlu0 3
    %357 = vperm.xlu0 %356, %v61
    %v358 = vpop.permute.xlu0 %357
    %360 = vset.pattern.permute.xlu0 3
    %361 = vperm.xlu0 %360, %v62
    %v362 = vpop.permute.xlu0 %361
    %v364 = vsel %vm334, %v342, 0.0
    %v365 = vsel %vm335, %v346, 0.0
    %v366 = vsel %vm336, %v350, 0.0
    %v367 = vsel %vm337, %v354, 0.0
    %v368 = vsel %vm338, %v358, 0.0
    %v369 = vsel %vm339, %v362, 0.0
    %v370 = vadd.f32 %v364, %v365
    %v371 = vadd.f32 %v370, %v366
    %v372 = vadd.f32 %v371, %v367
    %v373 = vadd.f32 %v372, %v368
    %v374 = vsel %vm172, %v369, 0.0
    %v375 = vadd.f32 %v373, %v374
    %v376 = vrot.slane %v375, 4
    %v377 = vadd.f32 %v375, %v376
    %v378 = vrot.slane %v377, 2
    %v379 = vadd.f32 %v377, %v378
    %v380 = vrot.slane %v379, 1
    %v381 = vadd.f32 %v379, %v380
    %382 = vst [vmem:[#allocation7 + $0x3] sm:$0x1] %v381
    // Predicated region
    $region18: #{tpu_custom_call.1} parent=1 // pred_check
      _
    $region19: #{tpu_custom_call.1} parent=1 // pred_check_branch
      %384 = sbr.rel (0) target = $region21
    $region20: #{tpu_custom_call.1} parent=1 // pred_region
      %386 = vsyncadd [#allocation4], 0
      %s388 = sshll.u32 [#allocation7], 4
      %s389 = int_to_ptr.vmem [resolvable:$true] %s388
      %s390 = sshll.u32 %s2, 4
      %s391 = int_to_ptr.hbm [resolvable:$true] %s390
      %393 = dma.vmem_to_hbm [thread:$0]  %s389, 64, %s391, [#allocation4]
    $region21: #{tpu_custom_call.1} parent=1 // pred_fallthru
      _
    // Predicated region
    $region22: #{tpu_custom_call.1} parent=1 // pred_check
      _
    $region23: #{tpu_custom_call.1} parent=1 // pred_check_branch
      %395 = sbr.rel (0) target = $region25
    $region24: #{tpu_custom_call.1} parent=1 // pred_region
      %397 = dma.done [#allocation4], 64
    $region25: #{tpu_custom_call.1} parent=1 // pred_fallthru
      _
    %398 = vsyncpa [#allocation3], 1
    %399 = vsyncpa [#allocation6], 1
    %400 = vsyncpa [#allocation4], 1

</llo_original>
